<compile_context>
chip_gen: v7x
topology: tpu7x:2x2x1
jax: 0.10.0
libtpu: 0.0.40
codegen_flags: <defaults>
</compile_context>

<pallas_src>
import jax
import jax.numpy as jnp
from jax.experimental import pallas as pl
from jax.experimental.pallas import tpu as pltpu


def _stem_kernel(w_ref, x_ref, o_ref):
    # w_ref: (Cout, Cin) resident weight, x_ref: (1, Cin, tile_hw) pixel tile,
    # o_ref: (1, Cout, tile_hw).  Tiny-K MXU matmul with f32 accumulation;
    # the kernel stays HBM-bound so the MXU path is not the bottleneck.
    o_ref[0] = jnp.dot(
        w_ref[...], x_ref[0], preferred_element_type=jnp.float32
    ).astype(o_ref.dtype)


def mednext_stem(x_nchw, weight, *, tile_hw=4096):
    """1x1 conv, no bias.  x_nchw: (N, Cin, H, W), weight: (Cout, Cin, 1, 1)."""
    n, cin, h, w = x_nchw.shape
    cout = weight.shape[0]
    hw = h * w

    # Native-layout views: no transposes, no extra HBM passes.
    wmat = weight.reshape(cout, cin)        # (Cout, Cin)
    x3d = x_nchw.reshape(n, cin, hw)        # (N, Cin, H*W)

    # Lane-dense pixel tile: multiple of 128, capped at (padded) H*W.
    # Double-buffered VMEM footprint at tile_hw=4096, Cout=64, f32:
    #   in  ~2*48 KiB, out ~2*1 MiB  -- far under even v7x's 64 MiB VMEM.
    tile_hw = max(128, min(tile_hw, pl.cdiv(hw, 128) * 128))
    hw_pad = pl.cdiv(hw, tile_hw) * tile_hw
    if hw_pad != hw:
        # Only pads the small Cin-channel input along its last axis; output is
        # sliced back below.  (Common MedNeXt spatial sizes divide cleanly.)
        x3d = jnp.pad(x3d, ((0, 0), (0, 0), (0, hw_pad - hw)))

    grid = (n, hw_pad // tile_hw)
    itemsize = jnp.dtype(x_nchw.dtype).itemsize
    cost = pl.CostEstimate(
        flops=2 * n * hw_pad * cin * cout,
        transcendentals=0,
        bytes_accessed=(x3d.size + wmat.size + n * cout * hw_pad) * itemsize,
    )

    y3d = pl.pallas_call(
        _stem_kernel,
        out_shape=jax.ShapeDtypeStruct((n, cout, hw_pad), x_nchw.dtype),
        grid_spec=pltpu.PrefetchScalarGridSpec(
            num_scalar_prefetch=0,
            grid=grid,
            in_specs=[
                # Weight (768 B): same block index every step -> stays resident.
                pl.BlockSpec((cout, cin), lambda b, j: (0, 0)),
                pl.BlockSpec((1, cin, tile_hw), lambda b, j: (b, 0, j)),
            ],
            out_specs=pl.BlockSpec((1, cout, tile_hw), lambda b, j: (b, 0, j)),
        ),
        compiler_params=pltpu.CompilerParams(
            # Both axes independent -> shards across TensorCores (v7x megacore).
            dimension_semantics=("parallel", "parallel"),
        ),
        cost_estimate=cost,
    )(wmat, x3d)

    if hw_pad != hw:
        y3d = y3d[:, :, :hw]
    return y3d.reshape(n, cout, h, w)   # free reshape, already NCHW order


if __name__ == "__main__":
    key = jax.random.PRNGKey(0)
    k_x, k_w = jax.random.split(key)

    # Module defaults: in_channels=3, out_channels=64. Small spatial shape.
    N, CIN, H, W = 2, 3, 16, 16
    COUT = 64

    x = jax.random.normal(k_x, (N, CIN, H, W), dtype=jnp.float32)
    # Conv2d weight shape (Cout, Cin, 1, 1).
    weight = jax.random.normal(k_w, (COUT, CIN, 1, 1), dtype=jnp.float32) * 0.1

    y = mednext_stem(x, weight)
    jax.block_until_ready(y)

    # Reference: 1x1 conv == einsum over the channel dim.
    y_ref = jnp.einsum("oc,nchw->nohw", weight.reshape(COUT, CIN), x)
    assert y.shape == (N, COUT, H, W), y.shape
    assert jnp.allclose(y, y_ref, atol=1e-5, rtol=1e-5)

    print("KERNEL_OK")
</pallas_src>

<mosaic_0001>
module attributes {stable_mosaic.version = 11 : i64} {
  func.func @_stem_kernel(%arg0: i32, %arg1: i32, %arg2: memref<64x3xf32, #tpu.memory_space<vmem>>, %arg3: memref<1x3x256xf32, #tpu.memory_space<vmem>>, %arg4: memref<1x64x256xf32, #tpu.memory_space<vmem>>) attributes {dimension_semantics = [#tpu.dimension_semantics<parallel>, #tpu.dimension_semantics<parallel>], iteration_bounds = array<i64: 2, 1>, scalar_prefetch = 0 : i64, scratch_operands = 0 : i64, tpu.core_type = #tpu.core_type<tc>, window_params = [{pipeline_mode = #tpu.pipeline_mode<synchronous>, transform_indices = @transform_0, window_bounds = array<i64: 64, 3>}, {transform_indices = @transform_1, window_bounds = array<i64: 1, 3, 256>}, {transform_indices = @transform_2, window_bounds = array<i64: 1, 64, 256>}]} {
    %c0 = arith.constant 0 : index
    %c0_0 = arith.constant 0 : index
    %0 = vector.load %arg2[%c0, %c0_0] : memref<64x3xf32, #tpu.memory_space<vmem>>, vector<64x3xf32>
    %c0_1 = arith.constant 0 : index
    %c0_2 = arith.constant 0 : index
    %c0_3 = arith.constant 0 : index
    %1 = vector.load %arg3[%c0_1, %c0_2, %c0_3] : memref<1x3x256xf32, #tpu.memory_space<vmem>>, vector<1x3x256xf32>
    %2 = vector.shape_cast %1 : vector<1x3x256xf32> to vector<3x256xf32>
    %cst = arith.constant dense<0.000000e+00> : vector<64x256xf32>
    %3 = tpu.matmul %0, %2, %cst {dimension_numbers = #tpu.dot_dimension_numbers<[1], [0], [0], [1], [0, 0, 1, 1], [], []>} : vector<64x3xf32>, vector<3x256xf32>, vector<64x256xf32> -> vector<64x256xf32>
    %c0_4 = arith.constant 0 : index
    %c0_5 = arith.constant 0 : index
    %c0_6 = arith.constant 0 : index
    %4 = vector.load %arg4[%c0_4, %c0_5, %c0_6] : memref<1x64x256xf32, #tpu.memory_space<vmem>>, vector<1x64x256xf32>
    %5 = vector.shape_cast %4 : vector<1x64x256xf32> to vector<64x256xf32>
    %6 = vector.shape_cast %3 : vector<64x256xf32> to vector<1x64x256xf32>
    tpu.vector_store %arg4[%c0_4, %c0_5, %c0_6], %6 {strides = array<i32>} : memref<1x64x256xf32, #tpu.memory_space<vmem>>, vector<1x64x256xf32>,
    return
  }
  func.func @transform_0(%arg0: i32, %arg1: i32) -> (i32, i32) {
    %c0_i32 = arith.constant 0 : i32
    %c0_i32_0 = arith.constant 0 : i32
    %c0_i32_1 = arith.constant 0 : i32
    return %c0_i32, %c0_i32_0 : i32, i32
  }
  func.func @transform_1(%arg0: i32, %arg1: i32) -> (i32, i32, i32) {
    %c0_i32 = arith.constant 0 : i32
    %c0_i32_0 = arith.constant 0 : i32
    return %arg0, %c0_i32, %arg1 : i32, i32, i32
  }
  func.func @transform_2(%arg0: i32, %arg1: i32) -> (i32, i32, i32) {
    %c0_i32 = arith.constant 0 : i32
    %c0_i32_0 = arith.constant 0 : i32
    return %arg0, %c0_i32, %arg1 : i32, i32, i32
  }
}

</mosaic_0001>

<llo_original>
// kernel: tpu_custom_call.1
$region0: #{tpu_custom_call.1}
  #allocation0 [shape = 'u32[]', space=smem, size = 0x4, offset = 0x4, fixed_abs, tag = 'smem constant byte address 0x4 - core index']
  #allocation1 [shape = 'u32[144,128]{1,0:T(1,128)}', space=vmem, size = 0x12000, scoped, tag = 'internal scratch']
  %s0 = inlined_call_operand.vmem [shape: f32[64,3], index: 0, kind: input, shape index: {}]
  %s1 = inlined_call_operand.vmem [shape: f32[2,3,256], index: 1, kind: input, shape index: {}]
  %s2 = inlined_call_operand.hbm [shape: f32[2,64,256], index: 2, kind: output, shape index: {}]
  %s3 = sld [smem:[#allocation0]]
  $region41: #{tpu_custom_call.1} parent=0
    _
  %s5 = ssub.s32 1, %s3
  %s6 = scalar_select 0, %s5, %s3
  $region1: #{tpu_custom_call.1} parent=0
    #allocation2 [shape = 'u8[131072]{0}', space=vmem, size = 0x20000, scoped, tag = 'output window, operand 0']
    #allocation3 [shape = 's32[2]{0}', space=sflag, size = 0x8, scoped, tag = 'scoped memory for tpu_custom_call.1']
    %7 = vsyncpa [#allocation3], 0
    %s8 = scalar_lea.sflag [#allocation3], 1
    %9 = vsyncpa %s8, 0
    loop: start=0, step=1, limit=4
    $region2: #{tpu_custom_call.1} parent=1 // loop_pre_header
      _
    $region3: #{tpu_custom_call.1} parent=1 // loop_header
      %s11 = sphi 0, %s15
      %p12 = scmp.ge.s32.totalorder %s11, 4
      %s18 = sphi 0, %s30
      %s19 = sphi 0, %s26
      %s20 = sphi 0, %s18
      %s21 = sphi 0, %s19
      %s22 = sphi 0, %s20
      %s23 = sphi 0, %s21
      %s31 = sphi 0, %s31
      %s33 = sphi 0, %s31
      %s34 = sphi 0, %s33
      %s48 = sphi 0, %s34
      %s56 = sphi 0, %s58
      %s59 = sphi 0, %s56
      %s60 = sphi 0, %s59
      %s76 = sphi 0, %s60
      %s84 = sphi 0, %s86
      %s87 = sphi 0, %s84
      %s88 = sphi 0, %s87
      %s104 = sphi 0, %s88
    $region4: #{tpu_custom_call.1} parent=1 // loop_header_branch
      %14 = sbr.rel (%p12) target = $region8
    $region5: #{tpu_custom_call.1} parent=1 // loop_body
      %s16 = ssub.s32 %s11, 1
      %s17 = ssub.s32 %s11, 2
      %s24 = sadd.s32 1, %s19
      %p25 = scmp.ge.s32.totalorder %s24, 1
      %s26 = scalar_select %p25, 0, %s24
      %s27 = sadd.s32 1, %s18
      %s28 = scalar_select %p25, %s27, %s18
      %p29 = scmp.ge.s32.totalorder %s28, 2
      %s30 = scalar_select %p29, 0, %s28
      %s32 = sadd.s32 %s31, 1
      %p35 = scmp.eq.s32.totalorder %s11, 1
      %p36 = scmp.ne.s32.totalorder %s31, %s33
      %p37 = scmp.eq.s32.totalorder %s11, 0
      %p38 = por %p36, %p37
      %p39 = scmp.ne.s32.totalorder %s31, %s33
      %p40 = scmp.eq.s32.totalorder %s16, 1
      %p41 = por %p39, %p40
      %p42 = scmp.ne.s32.totalorder %s33, %s34
      %p43 = scmp.eq.s32.totalorder %s16, 0
      %p44 = por %p42, %p43
      %p45 = scmp.ne.s32.totalorder %s33, %s34
      %p46 = scmp.eq.s32.totalorder %s17, 1
      %p47 = por %p45, %p46
      %p49 = scmp.ne.s32.totalorder %s34, %s48
      %p50 = scmp.eq.s32.totalorder %s17, 0
      %p51 = por %p49, %p50
      %s52 = ssub.s32 %s18, %s30
      %s53 = ssub.s32 %s19, %s26
      %s54 = sor.u32 %s52, %s53
      %p55 = scmp.eq.s32.totalorder %s54, 0
      %s57 = sadd.s32 %s56, 1
      %s58 = scalar_select %p55, %s56, %s57
      %p61 = pneg %p55
      %p62 = scmp.eq.s32.totalorder %s11, 1
      %p63 = por %p61, %p62
      %p64 = scmp.ne.s32.totalorder %s56, %s59
      %p65 = scmp.eq.s32.totalorder %s11, 0
      %p66 = por %p64, %p65
      %p67 = scmp.ne.s32.totalorder %s56, %s59
      %p68 = scmp.eq.s32.totalorder %s16, 1
      %p69 = por %p67, %p68
      %p70 = scmp.ne.s32.totalorder %s59, %s60
      %p71 = scmp.eq.s32.totalorder %s16, 0
      %p72 = por %p70, %p71
      %p73 = scmp.ne.s32.totalorder %s59, %s60
      %p74 = scmp.eq.s32.totalorder %s17, 1
      %p75 = por %p73, %p74
      %p77 = scmp.ne.s32.totalorder %s60, %s76
      %p78 = scmp.eq.s32.totalorder %s17, 0
      %p79 = por %p77, %p78
      %s80 = ssub.s32 %s18, %s30
      %s81 = ssub.s32 %s19, %s26
      %s82 = sor.u32 %s80, %s81
      %p83 = scmp.eq.s32.totalorder %s82, 0
      %s85 = sadd.s32 %s84, 1
      %s86 = scalar_select %p83, %s84, %s85
      %p89 = pneg %p83
      %p90 = scmp.eq.s32.totalorder %s11, 1
      %p91 = por %p89, %p90
      %p92 = scmp.ne.s32.totalorder %s84, %s87
      %p93 = scmp.eq.s32.totalorder %s11, 0
      %p94 = por %p92, %p93
      %p95 = scmp.ne.s32.totalorder %s84, %s87
      %p96 = scmp.eq.s32.totalorder %s16, 1
      %p97 = por %p95, %p96
      %p98 = scmp.ne.s32.totalorder %s87, %s88
      %p99 = scmp.eq.s32.totalorder %s16, 0
      %p100 = por %p98, %p99
      %p101 = scmp.ne.s32.totalorder %s87, %s88
      %p102 = scmp.eq.s32.totalorder %s17, 1
      %p103 = por %p101, %p102
      %p105 = scmp.ne.s32.totalorder %s88, %s104
      %p106 = scmp.eq.s32.totalorder %s17, 0
      %p107 = por %p105, %p106
      %p108 = scmp.le.s32.totalorder 1, %s11
      %p109 = scmp.lt.s32.totalorder %s11, 3
      %p110 = pnand %p108, %p109
      %p111 = pneg %p110
      // Predicated region
      $region9: #{tpu_custom_call.1} parent=5 // pred_check
        _
      $region10: #{tpu_custom_call.1} parent=5 // pred_check_branch
        %113 = sbr.rel (%p110) target = $region12
      $region11: #{tpu_custom_call.1} parent=5 // pred_region
        %s114 = ssub.s32 %s11, 1
        // Predicated region
        $region13: #{tpu_custom_call.1} parent=11 // pred_check
          %p115 = pneg %p44
        $region14: #{tpu_custom_call.1} parent=11 // pred_check_branch
          %117 = sbr.rel (%p115) target = $region16
        $region15: #{tpu_custom_call.1} parent=11 // pred_region
          _
        $region16: #{tpu_custom_call.1} parent=11 // pred_fallthru
          _
      $region12: #{tpu_custom_call.1} parent=5 // pred_fallthru
        _
      %p118 = scmp.lt.s32.totalorder %s11, 2
      // Predicated region
      $region17: #{tpu_custom_call.1} parent=5 // pred_check
        %p119 = pneg %p118
      $region18: #{tpu_custom_call.1} parent=5 // pred_check_branch
        %121 = sbr.rel (%p119) target = $region20
      $region19: #{tpu_custom_call.1} parent=5 // pred_region
        // Predicated region
        $region21: #{tpu_custom_call.1} parent=19 // pred_check
          %p122 = pneg %p66
        $region22: #{tpu_custom_call.1} parent=19 // pred_check_branch
          %124 = sbr.rel (%p122) target = $region24
        $region23: #{tpu_custom_call.1} parent=19 // pred_region
          %s125 = smul.u32 2, %s19
          %p126 = scmp.lt.s32.totalorder %s18, 1
          %s127 = scalar_select %p126, %s18, 1
          %p128 = scmp.lt.s32.totalorder %s125, 1
          %s129 = scalar_select %p128, %s125, 1
          %s130 = smul.addr %s127, 2
          %s131 = sadd.s32 %s129, %s130
          %s132 = smul.addr %s131, 4
          %s133 = scalar_lea.vmem %s1, %s132
          %s134 = smul.u32 2, %s19
        $region24: #{tpu_custom_call.1} parent=19 // pred_fallthru
          _
      $region20: #{tpu_custom_call.1} parent=5 // pred_fallthru
        _
      %p135 = scmp.le.s32.totalorder 1, %s11
      %p136 = scmp.lt.s32.totalorder %s11, 3
      %p137 = pnand %p135, %p136
      %p138 = pneg %p137
      // Predicated region
      $region25: #{tpu_custom_call.1} parent=5 // pred_check
        _
      $region26: #{tpu_custom_call.1} parent=5 // pred_check_branch
        %140 = sbr.rel (%p137) target = $region28
      $region27: #{tpu_custom_call.1} parent=5 // pred_region
        %s141 = ssub.s32 %s11, 1
        %p142 = pneg %p44
        %p143 = pneg %p41
        %s144 = smul.u32 2, %s21
        %p145 = scmp.lt.s32.totalorder %s20, 1
        %s146 = scalar_select %p145, %s20, 1
        %p147 = scmp.lt.s32.totalorder %s144, 1
        %s148 = scalar_select %p147, %s144, 1
        %s149 = smul.addr %s146, 2
        %s150 = sadd.s32 %s148, %s149
        %s151 = smul.addr %s150, 4
        %s152 = scalar_lea.vmem %s1, %s151
        %p153 = pneg %p72
        %p154 = pneg %p69
        %p155 = pneg %p100
        %p156 = pneg %p97
        %s157 = sand.u32 %s87, 1
        %s158 = scalar_lea.sflag [#allocation3], %s157
        %s159 = sand.u32 %s87, 1
        %s160 = smul.addr %s159, 128
        %s161 = scalar_lea.vmem [#allocation2], %s160
        %s162 = smul.u32 2, %s21
        %p163 = scmp.lt.s32.totalorder %s20, 1
        %s164 = scalar_select %p163, %s20, 1
        %p165 = scmp.lt.s32.totalorder %s162, 1
        %s166 = scalar_select %p165, %s162, 1
        %s167 = smul.addr %s164, 2
        %s168 = sadd.s32 %s166, %s167
        %s169 = smul.addr %s168, 4
        %s170 = scalar_lea.vmem %s1, %s169
        %s171 = smul.u32 2, %s21
        %s172 = smul.u32 2, %s21
        %v173 = vld [vmem:[%s0] sm:$0xff]
        %v174 = vld [vmem:[%s0 + $0x8] sm:$0xff]
        %v175 = vld [vmem:[%s0 + $0x10] sm:$0xff]
        %v176 = vld [vmem:[%s0 + $0x18] sm:$0xff]
        %v177 = vld [vmem:[%s0 + $0x20] sm:$0xff]
        %v178 = vld [vmem:[%s0 + $0x28] sm:$0xff]
        %v179 = vld [vmem:[%s0 + $0x30] sm:$0xff]
        %v180 = vld [vmem:[%s0 + $0x38] sm:$0xff]
        %v181 = vld [vmem:[%s170] sm:$0x77]
        %v183 = vcombine.high %v181, %v181
        %vm184 = vcmask 23552
        %v186 = vsel %vm184, %v173, 0
        %v189 = vsel %vm184, %v174, 0
        %v192 = vsel %vm184, %v175, 0
        %v195 = vsel %vm184, %v176, 0
        %v198 = vsel %vm184, %v177, 0
        %v201 = vsel %vm184, %v178, 0
        %v204 = vsel %vm184, %v179, 0
        %v207 = vsel %vm184, %v180, 0
        %vm209 = vcmask 1042432
        %v210 = vsel %vm209, %v181, 0
        %v212 = vsel %vm209, %v183, 0
        %214 = vmatprep.subr.mxu0 %v212
        %215 = vmatpush1.msra.mxu0 %v210
        %216 = vmatprep.subr.mxu0 0.0
        %217 = vmatpush1.msra.mxu0 0.0
        %218 = vmatprep.subr.mxu0 0.0
        %219 = vmatpush1.msra.mxu0 0.0
        %220 = vmatprep.subr.mxu0 0.0
        %221 = vmatpush1.msra.mxu0 0.0
        %222 = vmatprep.subr.mxu0 0.0
        %223 = vmatpush1.msra.mxu0 0.0
        %224 = vmatprep.subr.mxu0 0.0
        %225 = vmatpush1.msra.mxu0 0.0
        %226 = vmatprep.subr.mxu0 0.0
        %227 = vmatpush1.msra.mxu0 0.0
        %228 = vmatprep.subr.mxu0 0.0
        %229 = vmatpush1.msra.mxu0 0.0
        %230 = vmatprep.subr.mxu0 0.0
        %231 = vmatpush1.msra.mxu0 0.0
        %232 = vmatprep.subr.mxu0 0.0
        %233 = vmatpush1.msra.mxu0 0.0
        %234 = vmatprep.subr.mxu0 0.0
        %235 = vmatpush1.msra.mxu0 0.0
        %236 = vmatprep.subr.mxu0 0.0
        %237 = vmatpush1.msra.mxu0 0.0
        %238 = vmatprep.subr.mxu0 0.0
        %239 = vmatpush1.msra.mxu0 0.0
        %240 = vmatprep.subr.mxu0 0.0
        %241 = vmatpush1.msra.mxu0 0.0
        %242 = vmatprep.subr.mxu0 0.0
        %243 = vmatpush1.msra.mxu0 0.0
        %244 = vmatprep.subr.mxu0 0.0
        %245 = vmatpush1.msra.mxu0 0.0
        %246 = vmatprep.subr.mxu0 0.0
        %247 = vmatpush1.msra.mxu0 0.0
        %248 = vmatprep.subr.mxu0 0.0
        %249 = vmatpush1.msra.mxu0 0.0
        %250 = vmatprep.subr.mxu0 0.0
        %251 = vmatpush1.msra.mxu0 0.0
        %252 = vmatprep.subr.mxu0 0.0
        %253 = vmatpush1.msra.mxu0 0.0
        %254 = vmatprep.subr.mxu0 0.0
        %255 = vmatpush1.msra.mxu0 0.0
        %256 = vmatprep.subr.mxu0 0.0
        %257 = vmatpush1.msra.mxu0 0.0
        %258 = vmatprep.subr.mxu0 0.0
        %259 = vmatpush1.msra.mxu0 0.0
        %260 = vmatprep.subr.mxu0 0.0
        %261 = vmatpush1.msra.mxu0 0.0
        %262 = vmatprep.subr.mxu0 0.0
        %263 = vmatpush1.msra.mxu0 0.0
        %264 = vmatprep.subr.mxu0 0.0
        %265 = vmatpush1.msra.mxu0 0.0
        %266 = vmatprep.subr.mxu0 0.0
        %267 = vmatpush1.msra.mxu0 0.0
        %268 = vmatprep.subr.mxu0 0.0
        %269 = vmatpush1.msra.mxu0 0.0
        %270 = vmatprep.subr.mxu0 0.0
        %271 = vmatpush1.msra.mxu0 0.0
        %272 = vmatprep.subr.mxu0 0.0
        %273 = vmatpush1.msra.mxu0 0.0
        %274 = vmatprep.subr.mxu0 0.0
        %275 = vmatpush1.msra.mxu0 0.0
        %276 = vmatprep.subr.mxu0 0.0
        %277 = vmatpush1.msra.mxu0 0.0
        %278 = vmatprep.mubr.f32.mxu0 0.0
        %279 = vmatmul.mubr.f32.gmra.mrb[0].mxu0 %v186
        %v280 = vpop.f32.mrb[0].mxu0
        %v281 = vadd.f32 0.0, %v280
        %v282 = vpop.f32.mrb[0].mxu0
        %v283 = vadd.f32 0.0, %v282
        %284 = vmatprep.mubr.f32.mxu0 0.0
        %285 = vmatmul.mubr.f32.gmra.mrb[0].mxu0 %v189
        %v286 = vpop.f32.mrb[0].mxu0
        %v287 = vadd.f32 0.0, %v286
        %v288 = vpop.f32.mrb[0].mxu0
        %v289 = vadd.f32 0.0, %v288
        %290 = vmatprep.mubr.f32.mxu0 0.0
        %291 = vmatmul.mubr.f32.gmra.mrb[0].mxu0 %v192
        %v292 = vpop.f32.mrb[0].mxu0
        %v293 = vadd.f32 0.0, %v292
        %v294 = vpop.f32.mrb[0].mxu0
        %v295 = vadd.f32 0.0, %v294
        %296 = vmatprep.mubr.f32.mxu0 0.0
        %297 = vmatmul.mubr.f32.gmra.mrb[0].mxu0 %v195
        %v298 = vpop.f32.mrb[0].mxu0
        %v299 = vadd.f32 0.0, %v298
        %v300 = vpop.f32.mrb[0].mxu0
        %v301 = vadd.f32 0.0, %v300
        %302 = vmatprep.mubr.f32.mxu0 0.0
        %303 = vmatmul.mubr.f32.gmra.mrb[0].mxu0 %v198
        %v304 = vpop.f32.mrb[0].mxu0
        %v305 = vadd.f32 0.0, %v304
        %v306 = vpop.f32.mrb[0].mxu0
        %v307 = vadd.f32 0.0, %v306
        %308 = vmatprep.mubr.f32.mxu0 0.0
        %309 = vmatmul.mubr.f32.gmra.mrb[0].mxu0 %v201
        %v310 = vpop.f32.mrb[0].mxu0
        %v311 = vadd.f32 0.0, %v310
        %v312 = vpop.f32.mrb[0].mxu0
        %v313 = vadd.f32 0.0, %v312
        %314 = vmatprep.mubr.f32.mxu0 0.0
        %315 = vmatmul.mubr.f32.gmra.mrb[0].mxu0 %v204
        %v316 = vpop.f32.mrb[0].mxu0
        %v317 = vadd.f32 0.0, %v316
        %v318 = vpop.f32.mrb[0].mxu0
        %v319 = vadd.f32 0.0, %v318
        %320 = vmatprep.mubr.f32.mxu0 0.0
        %321 = vmatmul.mubr.f32.gmra.mrb[0].mxu0 %v207
        %v322 = vpop.f32.mrb[0].mxu0
        %v323 = vadd.f32 0.0, %v322
        %v324 = vpop.f32.mrb[0].mxu0
        %v325 = vadd.f32 0.0, %v324
        %326 = vdwg.mxu0
        %327 = vst [vmem:[%s161] sm:$0xff] %v281
        %328 = vst [vmem:[%s161 + $0x8] sm:$0xff] %v283
        %329 = vst [vmem:[%s161 + $0x10] sm:$0xff] %v287
        %330 = vst [vmem:[%s161 + $0x18] sm:$0xff] %v289
        %331 = vst [vmem:[%s161 + $0x20] sm:$0xff] %v293
        %332 = vst [vmem:[%s161 + $0x28] sm:$0xff] %v295
        %333 = vst [vmem:[%s161 + $0x30] sm:$0xff] %v299
        %334 = vst [vmem:[%s161 + $0x38] sm:$0xff] %v301
        %335 = vst [vmem:[%s161 + $0x40] sm:$0xff] %v305
        %336 = vst [vmem:[%s161 + $0x48] sm:$0xff] %v307
        %337 = vst [vmem:[%s161 + $0x50] sm:$0xff] %v311
        %338 = vst [vmem:[%s161 + $0x58] sm:$0xff] %v313
        %339 = vst [vmem:[%s161 + $0x60] sm:$0xff] %v317
        %340 = vst [vmem:[%s161 + $0x68] sm:$0xff] %v319
        %341 = vst [vmem:[%s161 + $0x70] sm:$0xff] %v323
        %342 = vst [vmem:[%s161 + $0x78] sm:$0xff] %v325
        %s343 = sand.u32 %s87, 1
        %s344 = scalar_lea.sflag [#allocation3], %s343
        %s345 = sand.u32 %s87, 1
        %s346 = smul.addr %s345, 128
        %s347 = scalar_lea.vmem [#allocation2], %s346
        // Predicated region
        $region29: #{tpu_custom_call.1} parent=27 // pred_check
          %p348 = pneg %p97
        $region30: #{tpu_custom_call.1} parent=27 // pred_check_branch
          %350 = sbr.rel (%p348) target = $region32
        $region31: #{tpu_custom_call.1} parent=27 // pred_region
          %s351 = smul.u32 2, %s21
          %s353 = ssub.s32 2048, 2048
          %354 = vsyncadd %s344, %s353
          %s355 = smul.addr %s20, 16
          %s356 = sadd.s32 %s351, %s355
          %s357 = smul.addr %s356, 128
          %s358 = scalar_lea.hbm %s2, %s357
          %s359 = sshll.u32 %s347, 4
          %s360 = int_to_ptr.vmem [resolvable:$true] %s359
          %365 = dma.vmem_to_hbm [thread:$0]  %s360, 2048, %s358, %s344, 256, 256, 16
        $region32: #{tpu_custom_call.1} parent=27 // pred_fallthru
          _
      $region28: #{tpu_custom_call.1} parent=5 // pred_fallthru
        _
      %p366 = scmp.le.s32.totalorder 2, %s11
      // Predicated region
      $region33: #{tpu_custom_call.1} parent=5 // pred_check
        %p367 = pneg %p366
      $region34: #{tpu_custom_call.1} parent=5 // pred_check_branch
        %369 = sbr.rel (%p367) target = $region36
      $region35: #{tpu_custom_call.1} parent=5 // pred_region
        %s370 = ssub.s32 %s11, 2
        // Predicated region
        $region37: #{tpu_custom_call.1} parent=35 // pred_check
          %p371 = pneg %p103
        $region38: #{tpu_custom_call.1} parent=35 // pred_check_branch
          %373 = sbr.rel (%p371) target = $region40
        $region39: #{tpu_custom_call.1} parent=35 // pred_region
          %s374 = sand.u32 %s88, 1
          %s375 = scalar_lea.sflag [#allocation3], %s374
          %s376 = sand.u32 %s88, 1
          %s377 = smul.addr %s376, 128
          %s378 = scalar_lea.vmem [#allocation2], %s377
          %379 = dma.done %s375, 2048
        $region40: #{tpu_custom_call.1} parent=35 // pred_fallthru
          _
      $region36: #{tpu_custom_call.1} parent=5 // pred_fallthru
        _
    $region6: #{tpu_custom_call.1} parent=1 // loop_footer
      %s15 = sadd.s32 1, %s11
    $region7: #{tpu_custom_call.1} parent=1 // loop_footer_branch
      %10 = sbr.rel target = $region3
    $region8: #{tpu_custom_call.1} parent=1 // loop_exit
      _
    %380 = vsyncpa [#allocation3], 1
    %s381 = scalar_lea.sflag [#allocation3], 1
    %382 = vsyncpa %s381, 1

</llo_original>
